<compile_context>
chip_gen: v6e
topology: v6e:2x2x1
jax: 0.10.0
libtpu: 0.0.40
codegen_flags: <defaults>
</compile_context>

<pallas_src>
import functools

import jax
import jax.numpy as jnp
from jax import lax
from jax.experimental import pallas as pl
from jax.experimental.pallas import tpu as pltpu

LN_EPS = 1e-5  # torch.nn.LayerNorm default eps


# ---------------------------------------------------------------------------
# kernel: per N-tile, LayerNorm each tap pixel over channels (affine already
#         folded into the weights), accumulate the patch matmul tap-by-tap on
#         the MXU (bf16 operands, f32 accumulation) directly into the output
#         block ref.
# ---------------------------------------------------------------------------
def _downsample_kernel(p_ref, w_ref, b_ref, o_ref, *, kk, cin):
    inv_c = 1.0 / float(cin)

    def xn_tap(t):
        xt = p_ref[t].astype(jnp.float32)                     # (TN, Cin), slab select
        s1 = jnp.sum(xt, axis=-1, keepdims=True)              # single pass: sum & sum-sq
        s2 = jnp.sum(xt * xt, axis=-1, keepdims=True)
        mu = s1 * inv_c
        var = jnp.maximum(s2 * inv_c - mu * mu, 0.0)
        return ((xt - mu) * lax.rsqrt(var + LN_EPS)).astype(jnp.bfloat16)

    if kk <= 8:
        # small tap count (width<=2): static unroll; first tap writes bias + dot
        o_ref[...] = b_ref[...] + jnp.dot(xn_tap(0), w_ref[0],
                                          preferred_element_type=jnp.float32)
        for t in range(1, kk):
            o_ref[...] += jnp.dot(xn_tap(t), w_ref[t],
                                  preferred_element_type=jnp.float32)
    else:
        # large tap count: don't fully unroll (code size / live-range blowup)
        o_ref[...] = jnp.broadcast_to(b_ref[...], o_ref.shape)

        def body(t, carry):
            o_ref[...] += jnp.dot(xn_tap(t), w_ref[t],
                                  preferred_element_type=jnp.float32)
            return carry

        lax.fori_loop(0, kk, body, 0, unroll=2)


# ---------------------------------------------------------------------------
# VMEM-budget helpers (generation-aware tiling)
# ---------------------------------------------------------------------------
def _vmem_budget_bytes():
    try:
        cap = int(pltpu.get_tpu_info().vmem_capacity_bytes)
    except Exception:
        cap = 64 << 20  # conservative fallback (v7x physical per-core)
    return min(int(cap * 0.75), 96 << 20)


def _pick_block_rows(kk, cin, dp, n, budget_bytes):
    # fixed residency: single-buffered weights + bias + compiler slack
    fixed = kk * cin * dp * 2 + dp * 4 + (2 << 20)
    # per row: double-buffered bf16 patch block + double-buffered f32 out block
    #          + f32 LN temporaries
    per_row = 2 * (kk * cin * 2) + 2 * (dp * 4) + 3 * cin * 4
    tn = (budget_bytes - fixed) // per_row
    tn = int(max(8, min(tn, 512)))
    tn = min(tn, pl.cdiv(n, 8) * 8)     # don't exceed (padded) problem size
    return max(8, (tn // 8) * 8)


def _resident_spec(shape, index_map):
    """BlockSpec for a grid-invariant operand: single pipeline buffer."""
    try:
        return pl.BlockSpec(shape, index_map, pipeline_mode=pl.Buffered(1))
    except (TypeError, AttributeError):      # older jax without pipeline_mode
        return pl.BlockSpec(shape, index_map)


# ---------------------------------------------------------------------------
# wrapper
# ---------------------------------------------------------------------------
def convnext_downsample(x_nchw, w_conv, b_conv, gamma, beta, *,
                        width, block_rows=None, nhwc_out=False):
    """LayerNorm2d(d_in) followed by Conv2d(d_in, d_out, kernel=stride=width).

    x_nchw : (B, Cin, H, W) torch NCHW layout.
    w_conv : (Dout, Cin, width, width) torch Conv2d weight layout.
    b_conv : (Dout,);  gamma, beta : (Cin,) LayerNorm affine params.
    Returns (B, Dout, H//width, W//width) f32 NCHW (set nhwc_out=True for NHWC).
    """
    B, Cin, H, W = x_nchw.shape
    k = int(width)
    Dout = w_conv.shape[0]
    Ho, Wo = H // k, W // k                       # Conv2d(stride=k) floors: crop
    x_nchw = x_nchw[:, :, : Ho * k, : Wo * k]
    KK = k * k
    N = B * Ho * Wo

    # lane-dense output padding: 256 tiles for big Dout (v6e/v7x MXU), 128 otherwise
    dmult = 256 if Dout > 128 else 128
    Dp = pl.cdiv(Dout, dmult) * dmult

    # --- weights/bias with the LayerNorm affine folded in -------------------
    w0 = w_conv.transpose(2, 3, 1, 0).reshape(KK, Cin, Dout).astype(jnp.float32)
    wf = w0 * gamma.astype(jnp.float32).reshape(1, Cin, 1)
    wf = jnp.pad(wf, ((0, 0), (0, 0), (0, Dp - Dout))).astype(jnp.bfloat16)
    bf = b_conv.astype(jnp.float32) + jnp.einsum(
        "c,tcd->d", beta.astype(jnp.float32), w0)
    bf = jnp.pad(bf, (0, Dp - Dout)).reshape(1, Dp).astype(jnp.float32)

    # --- tap-major bf16 patches: patches[t = kh*k+kw, n, c] ------------------
    # TODO(synk): if the surrounding network is JAX-native NHWC, accept NHWC here
    # (and return NHWC) to drop this shuffle and the final transpose entirely.
    p = x_nchw.reshape(B, Cin, Ho, k, Wo, k).transpose(3, 5, 0, 2, 4, 1)
    patches = p.reshape(KK, N, Cin).astype(jnp.bfloat16)

    # --- VMEM-budget-aware row tiling of the N axis --------------------------
    budget = _vmem_budget_bytes()
    if block_rows is None:
        TN = _pick_block_rows(KK, Cin, Dp, N, budget)
    else:
        TN = max(8, (int(block_rows) // 8) * 8)
        TN = min(TN, pl.cdiv(N, 8) * 8)
    Npad = pl.cdiv(N, TN) * TN
    if Npad != N:
        patches = jnp.pad(patches, ((0, 0), (0, Npad - N), (0, 0)))
    grid = (Npad // TN,)

    kern = functools.partial(_downsample_kernel, kk=KK, cin=Cin)
    out = pl.pallas_call(
        kern,
        out_shape=jax.ShapeDtypeStruct((Npad, Dp), jnp.float32),
        grid=grid,
        in_specs=[
            pl.BlockSpec((KK, TN, Cin), lambda i: (0, i, 0)),    # streamed patches
            _resident_spec((KK, Cin, Dp), lambda i: (0, 0, 0)),  # weights (resident)
            _resident_spec((1, Dp), lambda i: (0, 0)),           # bias (resident)
        ],
        out_specs=pl.BlockSpec((TN, Dp), lambda i: (i, 0)),
        compiler_params=pltpu.CompilerParams(
            dimension_semantics=("parallel",),
            vmem_limit_bytes=int(budget)),
    )(patches, wf, bf)

    out = out[:N, :Dout].reshape(B, Ho, Wo, Dout)
    if nhwc_out:
        return out
    return out.transpose(0, 3, 1, 2)  # NCHW, matching the PyTorch module


# ---------------------------------------------------------------------------
# pure-JAX reference (for correctness check only)
# ---------------------------------------------------------------------------
def _reference(x, w, b, gamma, beta, width):
    xh = jnp.transpose(x, (0, 2, 3, 1))
    mu = jnp.mean(xh, axis=-1, keepdims=True)
    var = jnp.mean(jnp.square(xh - mu), axis=-1, keepdims=True)
    xn = (xh - mu) / jnp.sqrt(var + LN_EPS) * gamma + beta
    xn = jnp.transpose(xn, (0, 3, 1, 2))
    y = lax.conv_general_dilated(xn, w, (width, width), "VALID",
                                 dimension_numbers=("NCHW", "OIHW", "NCHW"))
    return y + b[None, :, None, None]


if __name__ == "__main__":
    key = jax.random.PRNGKey(0)
    kx, kw, kb, kg, kbt = jax.random.split(key, 5)

    # small shapes consistent with ConvNextDownsample(d_in=4, d_out=8, width=2)
    B, Cin, H, W = 2, 4, 16, 16
    Dout, width = 8, 2

    x = jax.random.normal(kx, (B, Cin, H, W), jnp.float32)
    w_conv = 0.1 * jax.random.normal(kw, (Dout, Cin, width, width), jnp.float32)
    b_conv = 0.05 * jax.random.normal(kb, (Dout,), jnp.float32)
    gamma = 1.0 + 0.1 * jax.random.normal(kg, (Cin,), jnp.float32)
    beta = 0.1 * jax.random.normal(kbt, (Cin,), jnp.float32)

    ref = _reference(x, w_conv, b_conv, gamma, beta, width)

    # explicit small tile -> multi-step pipelined grid (N=128, TN=32 -> 4 steps)
    out = convnext_downsample(x, w_conv, b_conv, gamma, beta,
                              width=width, block_rows=32)
    out = jax.block_until_ready(out)
    assert out.shape == (B, Dout, H // width, W // width), out.shape
    assert bool(jnp.all(jnp.isfinite(out)))
    err = float(jnp.max(jnp.abs(out - ref)))
    assert err < 5e-2, f"max abs err vs reference = {err}"  # bf16 operands -> loose tol

    # VMEM-budget-derived tile size path
    out2 = convnext_downsample(x, w_conv, b_conv, gamma, beta, width=width)
    out2 = jax.block_until_ready(out2)
    err2 = float(jnp.max(jnp.abs(out2 - ref)))
    assert err2 < 5e-2, f"max abs err (auto tile) vs reference = {err2}"

    print("KERNEL_OK")
</pallas_src>

<mosaic_0001>
module attributes {stable_mosaic.version = 11 : i64} {
  func.func @_downsample_kernel(%arg0: i32, %arg1: memref<4x32x4xbf16, #tpu.memory_space<vmem>>, %arg2: memref<4x4x128xbf16, #tpu.memory_space<vmem>>, %arg3: memref<1x128xf32, #tpu.memory_space<vmem>>, %arg4: memref<32x128xf32, #tpu.memory_space<vmem>>) attributes {dimension_semantics = [#tpu.dimension_semantics<parallel>], iteration_bounds = array<i64: 4>, scalar_prefetch = 0 : i64, scratch_operands = 0 : i64, tpu.core_type = #tpu.core_type<tc>, window_params = [{transform_indices = @transform_0, window_bounds = array<i64: 4, 32, 4>}, {pipeline_mode = #tpu.pipeline_mode<synchronous>, transform_indices = @transform_1, window_bounds = array<i64: 4, 4, 128>}, {pipeline_mode = #tpu.pipeline_mode<synchronous>, transform_indices = @transform_2, window_bounds = array<i64: 1, 128>}, {transform_indices = @transform_3, window_bounds = array<i64: 32, 128>}]} {
    %c0 = arith.constant 0 : index
    %c0_0 = arith.constant 0 : index
    %0 = vector.load %arg3[%c0, %c0_0] : memref<1x128xf32, #tpu.memory_space<vmem>>, vector<1x128xf32>
    %c0_1 = arith.constant 0 : index
    %c0_2 = arith.constant 0 : index
    %c0_3 = arith.constant 0 : index
    %1 = vector.load %arg1[%c0_1, %c0_2, %c0_3] : memref<4x32x4xbf16, #tpu.memory_space<vmem>>, vector<1x32x4xbf16>
    %2 = vector.shape_cast %1 : vector<1x32x4xbf16> to vector<32x4xbf16>
    %3 = arith.extf %2 : vector<32x4xbf16> to vector<32x4xf32>
    %cst = arith.constant dense<0.000000e+00> : vector<32xf32>
    %4 = vector.multi_reduction <add>, %3, %cst [1] : vector<32x4xf32> to vector<32xf32>
    %5 = vector.shape_cast %4 : vector<32xf32> to vector<32x1xf32>
    %6 = arith.mulf %3, %3 : vector<32x4xf32>
    %cst_4 = arith.constant dense<0.000000e+00> : vector<32xf32>
    %7 = vector.multi_reduction <add>, %6, %cst_4 [1] : vector<32x4xf32> to vector<32xf32>
    %8 = vector.shape_cast %7 : vector<32xf32> to vector<32x1xf32>
    %cst_5 = arith.constant 2.500000e-01 : f32
    %9 = vector.broadcast %cst_5 : f32 to vector<32x1xf32>
    %10 = arith.mulf %5, %9 : vector<32x1xf32>
    %cst_6 = arith.constant 2.500000e-01 : f32
    %11 = vector.broadcast %cst_6 : f32 to vector<32x1xf32>
    %12 = arith.mulf %8, %11 : vector<32x1xf32>
    %13 = arith.mulf %10, %10 : vector<32x1xf32>
    %14 = arith.subf %12, %13 : vector<32x1xf32>
    %cst_7 = arith.constant 0.000000e+00 : f32
    %15 = vector.broadcast %cst_7 : f32 to vector<32x1xf32>
    %16 = arith.maximumf %14, %15 : vector<32x1xf32>
    %17 = vector.broadcast %10 : vector<32x1xf32> to vector<32x4xf32>
    %18 = arith.subf %3, %17 : vector<32x4xf32>
    %cst_8 = arith.constant 9.99999974E-6 : f32
    %19 = vector.broadcast %cst_8 : f32 to vector<32x1xf32>
    %20 = arith.addf %16, %19 : vector<32x1xf32>
    %21 = math.rsqrt %20 : vector<32x1xf32>
    %22 = vector.broadcast %21 : vector<32x1xf32> to vector<32x4xf32>
    %23 = arith.mulf %18, %22 : vector<32x4xf32>
    %24 = arith.truncf %23 : vector<32x4xf32> to vector<32x4xbf16>
    %c0_9 = arith.constant 0 : index
    %c0_10 = arith.constant 0 : index
    %c0_11 = arith.constant 0 : index
    %25 = vector.load %arg2[%c0_9, %c0_10, %c0_11] : memref<4x4x128xbf16, #tpu.memory_space<vmem>>, vector<1x4x128xbf16>
    %26 = vector.shape_cast %25 : vector<1x4x128xbf16> to vector<4x128xbf16>
    %cst_12 = arith.constant dense<0.000000e+00> : vector<32x128xf32>
    %27 = tpu.matmul %24, %26, %cst_12 {dimension_numbers = #tpu.dot_dimension_numbers<[1], [0], [0], [1], [0, 0, 1, 1], [], []>} : vector<32x4xbf16>, vector<4x128xbf16>, vector<32x128xf32> -> vector<32x128xf32>
    %28 = vector.broadcast %0 : vector<1x128xf32> to vector<32x128xf32>
    %29 = arith.addf %28, %27 : vector<32x128xf32>
    %c0_13 = arith.constant 0 : index
    %c0_14 = arith.constant 0 : index
    %30 = vector.load %arg4[%c0_13, %c0_14] : memref<32x128xf32, #tpu.memory_space<vmem>>, vector<32x128xf32>
    tpu.vector_store %arg4[%c0_13, %c0_14], %29 {strides = array<i32>} : memref<32x128xf32, #tpu.memory_space<vmem>>, vector<32x128xf32>,
    %c0_15 = arith.constant 0 : index
    %c0_16 = arith.constant 0 : index
    %31 = vector.load %arg4[%c0_15, %c0_16] : memref<32x128xf32, #tpu.memory_space<vmem>>, vector<32x128xf32>
    %c1 = arith.constant 1 : index
    %c0_17 = arith.constant 0 : index
    %c0_18 = arith.constant 0 : index
    %32 = vector.load %arg1[%c1, %c0_17, %c0_18] : memref<4x32x4xbf16, #tpu.memory_space<vmem>>, vector<1x32x4xbf16>
    %33 = vector.shape_cast %32 : vector<1x32x4xbf16> to vector<32x4xbf16>
    %34 = arith.extf %33 : vector<32x4xbf16> to vector<32x4xf32>
    %cst_19 = arith.constant dense<0.000000e+00> : vector<32xf32>
    %35 = vector.multi_reduction <add>, %34, %cst_19 [1] : vector<32x4xf32> to vector<32xf32>
    %36 = vector.shape_cast %35 : vector<32xf32> to vector<32x1xf32>
    %37 = arith.mulf %34, %34 : vector<32x4xf32>
    %cst_20 = arith.constant dense<0.000000e+00> : vector<32xf32>
    %38 = vector.multi_reduction <add>, %37, %cst_20 [1] : vector<32x4xf32> to vector<32xf32>
    %39 = vector.shape_cast %38 : vector<32xf32> to vector<32x1xf32>
    %cst_21 = arith.constant 2.500000e-01 : f32
    %40 = vector.broadcast %cst_21 : f32 to vector<32x1xf32>
    %41 = arith.mulf %36, %40 : vector<32x1xf32>
    %cst_22 = arith.constant 2.500000e-01 : f32
    %42 = vector.broadcast %cst_22 : f32 to vector<32x1xf32>
    %43 = arith.mulf %39, %42 : vector<32x1xf32>
    %44 = arith.mulf %41, %41 : vector<32x1xf32>
    %45 = arith.subf %43, %44 : vector<32x1xf32>
    %cst_23 = arith.constant 0.000000e+00 : f32
    %46 = vector.broadcast %cst_23 : f32 to vector<32x1xf32>
    %47 = arith.maximumf %45, %46 : vector<32x1xf32>
    %48 = vector.broadcast %41 : vector<32x1xf32> to vector<32x4xf32>
    %49 = arith.subf %34, %48 : vector<32x4xf32>
    %cst_24 = arith.constant 9.99999974E-6 : f32
    %50 = vector.broadcast %cst_24 : f32 to vector<32x1xf32>
    %51 = arith.addf %47, %50 : vector<32x1xf32>
    %52 = math.rsqrt %51 : vector<32x1xf32>
    %53 = vector.broadcast %52 : vector<32x1xf32> to vector<32x4xf32>
    %54 = arith.mulf %49, %53 : vector<32x4xf32>
    %55 = arith.truncf %54 : vector<32x4xf32> to vector<32x4xbf16>
    %c1_25 = arith.constant 1 : index
    %c0_26 = arith.constant 0 : index
    %c0_27 = arith.constant 0 : index
    %56 = vector.load %arg2[%c1_25, %c0_26, %c0_27] : memref<4x4x128xbf16, #tpu.memory_space<vmem>>, vector<1x4x128xbf16>
    %57 = vector.shape_cast %56 : vector<1x4x128xbf16> to vector<4x128xbf16>
    %cst_28 = arith.constant dense<0.000000e+00> : vector<32x128xf32>
    %58 = tpu.matmul %55, %57, %cst_28 {dimension_numbers = #tpu.dot_dimension_numbers<[1], [0], [0], [1], [0, 0, 1, 1], [], []>} : vector<32x4xbf16>, vector<4x128xbf16>, vector<32x128xf32> -> vector<32x128xf32>
    %59 = arith.addf %31, %58 : vector<32x128xf32>
    %c0_29 = arith.constant 0 : index
    %c0_30 = arith.constant 0 : index
    %60 = vector.load %arg4[%c0_29, %c0_30] : memref<32x128xf32, #tpu.memory_space<vmem>>, vector<32x128xf32>
    tpu.vector_store %arg4[%c0_29, %c0_30], %59 {strides = array<i32>} : memref<32x128xf32, #tpu.memory_space<vmem>>, vector<32x128xf32>,
    %c0_31 = arith.constant 0 : index
    %c0_32 = arith.constant 0 : index
    %61 = vector.load %arg4[%c0_31, %c0_32] : memref<32x128xf32, #tpu.memory_space<vmem>>, vector<32x128xf32>
    %c2 = arith.constant 2 : index
    %c0_33 = arith.constant 0 : index
    %c0_34 = arith.constant 0 : index
    %62 = vector.load %arg1[%c2, %c0_33, %c0_34] : memref<4x32x4xbf16, #tpu.memory_space<vmem>>, vector<1x32x4xbf16>
    %63 = vector.shape_cast %62 : vector<1x32x4xbf16> to vector<32x4xbf16>
    %64 = arith.extf %63 : vector<32x4xbf16> to vector<32x4xf32>
    %cst_35 = arith.constant dense<0.000000e+00> : vector<32xf32>
    %65 = vector.multi_reduction <add>, %64, %cst_35 [1] : vector<32x4xf32> to vector<32xf32>
    %66 = vector.shape_cast %65 : vector<32xf32> to vector<32x1xf32>
    %67 = arith.mulf %64, %64 : vector<32x4xf32>
    %cst_36 = arith.constant dense<0.000000e+00> : vector<32xf32>
    %68 = vector.multi_reduction <add>, %67, %cst_36 [1] : vector<32x4xf32> to vector<32xf32>
    %69 = vector.shape_cast %68 : vector<32xf32> to vector<32x1xf32>
    %cst_37 = arith.constant 2.500000e-01 : f32
    %70 = vector.broadcast %cst_37 : f32 to vector<32x1xf32>
    %71 = arith.mulf %66, %70 : vector<32x1xf32>
    %cst_38 = arith.constant 2.500000e-01 : f32
    %72 = vector.broadcast %cst_38 : f32 to vector<32x1xf32>
    %73 = arith.mulf %69, %72 : vector<32x1xf32>
    %74 = arith.mulf %71, %71 : vector<32x1xf32>
    %75 = arith.subf %73, %74 : vector<32x1xf32>
    %cst_39 = arith.constant 0.000000e+00 : f32
    %76 = vector.broadcast %cst_39 : f32 to vector<32x1xf32>
    %77 = arith.maximumf %75, %76 : vector<32x1xf32>
    %78 = vector.broadcast %71 : vector<32x1xf32> to vector<32x4xf32>
    %79 = arith.subf %64, %78 : vector<32x4xf32>
    %cst_40 = arith.constant 9.99999974E-6 : f32
    %80 = vector.broadcast %cst_40 : f32 to vector<32x1xf32>
    %81 = arith.addf %77, %80 : vector<32x1xf32>
    %82 = math.rsqrt %81 : vector<32x1xf32>
    %83 = vector.broadcast %82 : vector<32x1xf32> to vector<32x4xf32>
    %84 = arith.mulf %79, %83 : vector<32x4xf32>
    %85 = arith.truncf %84 : vector<32x4xf32> to vector<32x4xbf16>
    %c2_41 = arith.constant 2 : index
    %c0_42 = arith.constant 0 : index
    %c0_43 = arith.constant 0 : index
    %86 = vector.load %arg2[%c2_41, %c0_42, %c0_43] : memref<4x4x128xbf16, #tpu.memory_space<vmem>>, vector<1x4x128xbf16>
    %87 = vector.shape_cast %86 : vector<1x4x128xbf16> to vector<4x128xbf16>
    %cst_44 = arith.constant dense<0.000000e+00> : vector<32x128xf32>
    %88 = tpu.matmul %85, %87, %cst_44 {dimension_numbers = #tpu.dot_dimension_numbers<[1], [0], [0], [1], [0, 0, 1, 1], [], []>} : vector<32x4xbf16>, vector<4x128xbf16>, vector<32x128xf32> -> vector<32x128xf32>
    %89 = arith.addf %61, %88 : vector<32x128xf32>
    %c0_45 = arith.constant 0 : index
    %c0_46 = arith.constant 0 : index
    %90 = vector.load %arg4[%c0_45, %c0_46] : memref<32x128xf32, #tpu.memory_space<vmem>>, vector<32x128xf32>
    tpu.vector_store %arg4[%c0_45, %c0_46], %89 {strides = array<i32>} : memref<32x128xf32, #tpu.memory_space<vmem>>, vector<32x128xf32>,
    %c0_47 = arith.constant 0 : index
    %c0_48 = arith.constant 0 : index
    %91 = vector.load %arg4[%c0_47, %c0_48] : memref<32x128xf32, #tpu.memory_space<vmem>>, vector<32x128xf32>
    %c3 = arith.constant 3 : index
    %c0_49 = arith.constant 0 : index
    %c0_50 = arith.constant 0 : index
    %92 = vector.load %arg1[%c3, %c0_49, %c0_50] : memref<4x32x4xbf16, #tpu.memory_space<vmem>>, vector<1x32x4xbf16>
    %93 = vector.shape_cast %92 : vector<1x32x4xbf16> to vector<32x4xbf16>
    %94 = arith.extf %93 : vector<32x4xbf16> to vector<32x4xf32>
    %cst_51 = arith.constant dense<0.000000e+00> : vector<32xf32>
    %95 = vector.multi_reduction <add>, %94, %cst_51 [1] : vector<32x4xf32> to vector<32xf32>
    %96 = vector.shape_cast %95 : vector<32xf32> to vector<32x1xf32>
    %97 = arith.mulf %94, %94 : vector<32x4xf32>
    %cst_52 = arith.constant dense<0.000000e+00> : vector<32xf32>
    %98 = vector.multi_reduction <add>, %97, %cst_52 [1] : vector<32x4xf32> to vector<32xf32>
    %99 = vector.shape_cast %98 : vector<32xf32> to vector<32x1xf32>
    %cst_53 = arith.constant 2.500000e-01 : f32
    %100 = vector.broadcast %cst_53 : f32 to vector<32x1xf32>
    %101 = arith.mulf %96, %100 : vector<32x1xf32>
    %cst_54 = arith.constant 2.500000e-01 : f32
    %102 = vector.broadcast %cst_54 : f32 to vector<32x1xf32>
    %103 = arith.mulf %99, %102 : vector<32x1xf32>
    %104 = arith.mulf %101, %101 : vector<32x1xf32>
    %105 = arith.subf %103, %104 : vector<32x1xf32>
    %cst_55 = arith.constant 0.000000e+00 : f32
    %106 = vector.broadcast %cst_55 : f32 to vector<32x1xf32>
    %107 = arith.maximumf %105, %106 : vector<32x1xf32>
    %108 = vector.broadcast %101 : vector<32x1xf32> to vector<32x4xf32>
    %109 = arith.subf %94, %108 : vector<32x4xf32>
    %cst_56 = arith.constant 9.99999974E-6 : f32
    %110 = vector.broadcast %cst_56 : f32 to vector<32x1xf32>
    %111 = arith.addf %107, %110 : vector<32x1xf32>
    %112 = math.rsqrt %111 : vector<32x1xf32>
    %113 = vector.broadcast %112 : vector<32x1xf32> to vector<32x4xf32>
    %114 = arith.mulf %109, %113 : vector<32x4xf32>
    %115 = arith.truncf %114 : vector<32x4xf32> to vector<32x4xbf16>
    %c3_57 = arith.constant 3 : index
    %c0_58 = arith.constant 0 : index
    %c0_59 = arith.constant 0 : index
    %116 = vector.load %arg2[%c3_57, %c0_58, %c0_59] : memref<4x4x128xbf16, #tpu.memory_space<vmem>>, vector<1x4x128xbf16>
    %117 = vector.shape_cast %116 : vector<1x4x128xbf16> to vector<4x128xbf16>
    %cst_60 = arith.constant dense<0.000000e+00> : vector<32x128xf32>
    %118 = tpu.matmul %115, %117, %cst_60 {dimension_numbers = #tpu.dot_dimension_numbers<[1], [0], [0], [1], [0, 0, 1, 1], [], []>} : vector<32x4xbf16>, vector<4x128xbf16>, vector<32x128xf32> -> vector<32x128xf32>
    %119 = arith.addf %91, %118 : vector<32x128xf32>
    %c0_61 = arith.constant 0 : index
    %c0_62 = arith.constant 0 : index
    %120 = vector.load %arg4[%c0_61, %c0_62] : memref<32x128xf32, #tpu.memory_space<vmem>>, vector<32x128xf32>
    tpu.vector_store %arg4[%c0_61, %c0_62], %119 {strides = array<i32>} : memref<32x128xf32, #tpu.memory_space<vmem>>, vector<32x128xf32>,
    return
  }
  func.func @transform_0(%arg0: i32) -> (i32, i32, i32) {
    %c0_i32 = arith.constant 0 : i32
    %c0_i32_0 = arith.constant 0 : i32
    %c0_i32_1 = arith.constant 0 : i32
    return %c0_i32, %arg0, %c0_i32_0 : i32, i32, i32
  }
  func.func @transform_1(%arg0: i32) -> (i32, i32, i32) {
    %c0_i32 = arith.constant 0 : i32
    %c0_i32_0 = arith.constant 0 : i32
    %c0_i32_1 = arith.constant 0 : i32
    %c0_i32_2 = arith.constant 0 : i32
    return %c0_i32, %c0_i32_0, %c0_i32_1 : i32, i32, i32
  }
  func.func @transform_2(%arg0: i32) -> (i32, i32) {
    %c0_i32 = arith.constant 0 : i32
    %c0_i32_0 = arith.constant 0 : i32
    %c0_i32_1 = arith.constant 0 : i32
    return %c0_i32, %c0_i32_0 : i32, i32
  }
  func.func @transform_3(%arg0: i32) -> (i32, i32) {
    %c0_i32 = arith.constant 0 : i32
    %c0_i32_0 = arith.constant 0 : i32
    return %arg0, %c0_i32 : i32, i32
  }
}

</mosaic_0001>

<llo_original>
// kernel: tpu_custom_call.1
$region0: #{tpu_custom_call.1}
  #allocation0 [shape = 'u32[]', space=smem, size = 0x4, offset = 0x4, fixed_abs, tag = 'smem constant byte address 0x4 - core index']
  #allocation1 [shape = 'u32[144,128]{1,0:T(1,128)}', space=vmem, size = 0x12000, scoped, tag = 'internal scratch']
  %s0 = inlined_call_operand.vmem [shape: bf16[4,128,4], index: 0, kind: input, shape index: {}]
  %s1 = inlined_call_operand.vmem [shape: bf16[4,4,128], index: 1, kind: input, shape index: {}]
  %s2 = inlined_call_operand.vmem [shape: f32[1,128], index: 2, kind: input, shape index: {}]
  %s3 = inlined_call_operand.hbm [shape: f32[128,128], index: 3, kind: output, shape index: {}]
  %s4 = sld [smem:[#allocation0]]
  $region86: #{tpu_custom_call.1} parent=0
    _
  %s6 = ssub.s32 1, %s4
  %s7 = scalar_select 0, %s6, %s4
  $region1: #{tpu_custom_call.1} parent=0
    #allocation2 [shape = 'u8[65536]{0}', space=vmem, size = 0x10000, scoped, tag = 'input window, operand 0']
    #allocation3 [shape = 'u8[32768]{0}', space=vmem, size = 0x8000, scoped, tag = 'output window, operand 0']
    #allocation4 [shape = 's32[2]{0}', space=sflag, size = 0x8, scoped, tag = 'scoped memory for tpu_custom_call.1']
    %8 = vsyncpa [#allocation4], 0
    %s9 = scalar_lea.sflag [#allocation4], 1
    %10 = vsyncpa %s9, 0
    loop: start=0, step=1, limit=6
    $region2: #{tpu_custom_call.1} parent=1 // loop_pre_header
      _
    $region3: #{tpu_custom_call.1} parent=1 // loop_header
      %s12 = sphi 0, %s16
      %p13 = scmp.ge.s32.totalorder %s12, 6
      %s22 = sphi 0, %s24
      %s25 = sphi 0, %s22
      %s26 = sphi 0, %s25
      %s42 = sphi 0, %s26
      %s46 = sphi 0, %s46
      %s48 = sphi 0, %s46
      %s49 = sphi 0, %s48
      %s63 = sphi 0, %s49
      %s67 = sphi 0, %s67
      %s69 = sphi 0, %s67
      %s70 = sphi 0, %s69
      %s84 = sphi 0, %s70
      %s90 = sphi 0, %s92
      %s93 = sphi 0, %s90
      %s94 = sphi 0, %s93
      %s110 = sphi 0, %s94
    $region4: #{tpu_custom_call.1} parent=1 // loop_header_branch
      %15 = sbr.rel (%p13) target = $region8
    $region5: #{tpu_custom_call.1} parent=1 // loop_body
      %s17 = ssub.s32 %s12, 1
      %s18 = ssub.s32 %s12, 2
      %s19 = sadd.s32 %s12, 1
      %s20 = ssub.s32 %s12, %s19
      %p21 = scmp.eq.s32.totalorder %s20, 0
      %s23 = sadd.s32 %s22, 1
      %s24 = scalar_select %p21, %s22, %s23
      %p27 = pneg %p21
      %p28 = scmp.eq.s32.totalorder %s12, 3
      %p29 = por %p27, %p28
      %p30 = scmp.ne.s32.totalorder %s22, %s25
      %p31 = scmp.eq.s32.totalorder %s12, 0
      %p32 = por %p30, %p31
      %p33 = scmp.ne.s32.totalorder %s22, %s25
      %p34 = scmp.eq.s32.totalorder %s17, 3
      %p35 = por %p33, %p34
      %p36 = scmp.ne.s32.totalorder %s25, %s26
      %p37 = scmp.eq.s32.totalorder %s17, 0
      %p38 = por %p36, %p37
      %p39 = scmp.ne.s32.totalorder %s25, %s26
      %p40 = scmp.eq.s32.totalorder %s18, 3
      %p41 = por %p39, %p40
      %p43 = scmp.ne.s32.totalorder %s26, %s42
      %p44 = scmp.eq.s32.totalorder %s18, 0
      %p45 = por %p43, %p44
      %s47 = sadd.s32 %s46, 1
      %p50 = scmp.eq.s32.totalorder %s12, 3
      %p51 = scmp.ne.s32.totalorder %s46, %s48
      %p52 = scmp.eq.s32.totalorder %s12, 0
      %p53 = por %p51, %p52
      %p54 = scmp.ne.s32.totalorder %s46, %s48
      %p55 = scmp.eq.s32.totalorder %s17, 3
      %p56 = por %p54, %p55
      %p57 = scmp.ne.s32.totalorder %s48, %s49
      %p58 = scmp.eq.s32.totalorder %s17, 0
      %p59 = por %p57, %p58
      %p60 = scmp.ne.s32.totalorder %s48, %s49
      %p61 = scmp.eq.s32.totalorder %s18, 3
      %p62 = por %p60, %p61
      %p64 = scmp.ne.s32.totalorder %s49, %s63
      %p65 = scmp.eq.s32.totalorder %s18, 0
      %p66 = por %p64, %p65
      %s68 = sadd.s32 %s67, 1
      %p71 = scmp.eq.s32.totalorder %s12, 3
      %p72 = scmp.ne.s32.totalorder %s67, %s69
      %p73 = scmp.eq.s32.totalorder %s12, 0
      %p74 = por %p72, %p73
      %p75 = scmp.ne.s32.totalorder %s67, %s69
      %p76 = scmp.eq.s32.totalorder %s17, 3
      %p77 = por %p75, %p76
      %p78 = scmp.ne.s32.totalorder %s69, %s70
      %p79 = scmp.eq.s32.totalorder %s17, 0
      %p80 = por %p78, %p79
      %p81 = scmp.ne.s32.totalorder %s69, %s70
      %p82 = scmp.eq.s32.totalorder %s18, 3
      %p83 = por %p81, %p82
      %p85 = scmp.ne.s32.totalorder %s70, %s84
      %p86 = scmp.eq.s32.totalorder %s18, 0
      %p87 = por %p85, %p86
      %s88 = ssub.s32 %s12, %s19
      %p89 = scmp.eq.s32.totalorder %s88, 0
      %s91 = sadd.s32 %s90, 1
      %s92 = scalar_select %p89, %s90, %s91
      %p95 = pneg %p89
      %p96 = scmp.eq.s32.totalorder %s12, 3
      %p97 = por %p95, %p96
      %p98 = scmp.ne.s32.totalorder %s90, %s93
      %p99 = scmp.eq.s32.totalorder %s12, 0
      %p100 = por %p98, %p99
      %p101 = scmp.ne.s32.totalorder %s90, %s93
      %p102 = scmp.eq.s32.totalorder %s17, 3
      %p103 = por %p101, %p102
      %p104 = scmp.ne.s32.totalorder %s93, %s94
      %p105 = scmp.eq.s32.totalorder %s17, 0
      %p106 = por %p104, %p105
      %p107 = scmp.ne.s32.totalorder %s93, %s94
      %p108 = scmp.eq.s32.totalorder %s18, 3
      %p109 = por %p107, %p108
      %p111 = scmp.ne.s32.totalorder %s94, %s110
      %p112 = scmp.eq.s32.totalorder %s18, 0
      %p113 = por %p111, %p112
      %p114 = scmp.le.s32.totalorder 1, %s12
      %p115 = scmp.lt.s32.totalorder %s12, 5
      %p116 = pnand %p114, %p115
      %p117 = pneg %p116
      // Predicated region
      $region9: #{tpu_custom_call.1} parent=5 // pred_check
        _
      $region10: #{tpu_custom_call.1} parent=5 // pred_check_branch
        %119 = sbr.rel (%p116) target = $region12
      $region11: #{tpu_custom_call.1} parent=5 // pred_region
        %s120 = ssub.s32 %s12, 1
        // Predicated region
        $region13: #{tpu_custom_call.1} parent=11 // pred_check
          %p121 = pneg %p59
        $region14: #{tpu_custom_call.1} parent=11 // pred_check_branch
          %123 = sbr.rel (%p121) target = $region16
        $region15: #{tpu_custom_call.1} parent=11 // pred_region
          _
        $region16: #{tpu_custom_call.1} parent=11 // pred_fallthru
          _
        // Predicated region
        $region17: #{tpu_custom_call.1} parent=11 // pred_check
          %p124 = pneg %p80
        $region18: #{tpu_custom_call.1} parent=11 // pred_check_branch
          %126 = sbr.rel (%p124) target = $region20
        $region19: #{tpu_custom_call.1} parent=11 // pred_region
          _
        $region20: #{tpu_custom_call.1} parent=11 // pred_fallthru
          _
      $region12: #{tpu_custom_call.1} parent=5 // pred_fallthru
        _
      %p127 = scmp.lt.s32.totalorder %s12, 4
      // Predicated region
      $region21: #{tpu_custom_call.1} parent=5 // pred_check
        %p128 = pneg %p127
      $region22: #{tpu_custom_call.1} parent=5 // pred_check_branch
        %130 = sbr.rel (%p128) target = $region24
      $region23: #{tpu_custom_call.1} parent=5 // pred_region
        // Predicated region
        $region25: #{tpu_custom_call.1} parent=23 // pred_check
          %p131 = pneg %p32
        $region26: #{tpu_custom_call.1} parent=23 // pred_check_branch
          %133 = sbr.rel (%p131) target = $region28
        $region27: #{tpu_custom_call.1} parent=23 // pred_region
          %s134 = sand.u32 %s22, 1
          %s135 = sand.u32 %s22, 1
          %s136 = smul.addr %s135, 64
          %s137 = scalar_lea.vmem [#allocation2], %s136
          %s138 = smul.u32 4, %s12
          %s139 = smul.addr %s138, 4
          %s140 = scalar_lea.vmem %s0, %s139
          // Predicated region
          $region29: #{tpu_custom_call.1} parent=27 // pred_check
            _
          $region30: #{tpu_custom_call.1} parent=27 // pred_check_branch
            %142 = sbr.rel (0) target = $region32
          $region31: #{tpu_custom_call.1} parent=27 // pred_region
            // Predicated region
            $region33: #{tpu_custom_call.1} parent=31 // pred_check
              _
            $region34: #{tpu_custom_call.1} parent=31 // pred_check_branch
              %144 = sbr.rel target = $region36
            $region35: #{tpu_custom_call.1} parent=31 // pred_region
              // Predicated region
              $region48: #{tpu_custom_call.1} parent=35 // pred_check
                _
              $region49: #{tpu_custom_call.1} parent=35 // pred_check_branch
                %190 = sbr.rel (0) target = $region51
              $region50: #{tpu_custom_call.1} parent=35 // pred_region
                loop: start=0, step=1, limit=1
                $region52: #{tpu_custom_call.1} parent=50 // loop_pre_header
                  _
                $region53: #{tpu_custom_call.1} parent=50 // loop_header
                  %s192 = sphi 0, %s196
                  %p193 = scmp.ge.s32.totalorder %s192, 1
                  %s197 = sphi %s140, %s140
                  %s198 = sphi %s137, %s137
                $region54: #{tpu_custom_call.1} parent=50 // loop_header_branch
                  %195 = sbr.rel (%p193) target = $region58
                $region55: #{tpu_custom_call.1} parent=50 // loop_body
                  _
                $region56: #{tpu_custom_call.1} parent=50 // loop_footer
                  %s196 = sadd.s32 1, %s192
                $region57: #{tpu_custom_call.1} parent=50 // loop_footer_branch
                  %191 = sbr.rel target = $region53
                $region58: #{tpu_custom_call.1} parent=50 // loop_exit
                  _
                %s200 = ssub.s32 16, 1
                loop: start=0, step=1, limit=1
                $region59: #{tpu_custom_call.1} parent=50 // loop_pre_header
                  _
                $region60: #{tpu_custom_call.1} parent=50 // loop_header
                  %s202 = sphi 0, %s206
                  %p203 = scmp.ge.s32.totalorder %s202, 1
                  %s207 = sphi %s140, %s140
                  %s208 = sphi %s137, %s137
                $region61: #{tpu_custom_call.1} parent=50 // loop_header_branch
                  %205 = sbr.rel (%p203) target = $region65
                $region62: #{tpu_custom_call.1} parent=50 // loop_body
                  %v209 = vld [vmem:[%s207] sm:%s200]
                  %210 = vst [vmem:[%s208] sm:%s200] %v209
                  %v211 = vld [vmem:[%s207 + $0x4] sm:%s200]
                  %212 = vst [vmem:[%s208 + $0x4] sm:%s200] %v211
                  %v213 = vld [vmem:[%s207 + $0x8] sm:%s200]
                  %214 = vst [vmem:[%s208 + $0x8] sm:%s200] %v213
                  %v215 = vld [vmem:[%s207 + $0xc] sm:%s200]
                  %216 = vst [vmem:[%s208 + $0xc] sm:%s200] %v215
                  %v217 = vld [vmem:[%s207 + $0x40] sm:%s200]
                  %218 = vst [vmem:[%s208 + $0x10] sm:%s200] %v217
                  %v219 = vld [vmem:[%s207 + $0x44] sm:%s200]
                  %220 = vst [vmem:[%s208 + $0x14] sm:%s200] %v219
                  %v221 = vld [vmem:[%s207 + $0x48] sm:%s200]
                  %222 = vst [vmem:[%s208 + $0x18] sm:%s200] %v221
                  %v223 = vld [vmem:[%s207 + $0x4c] sm:%s200]
                  %224 = vst [vmem:[%s208 + $0x1c] sm:%s200] %v223
                  %v225 = vld [vmem:[%s207 + $0x80] sm:%s200]
                  %226 = vst [vmem:[%s208 + $0x20] sm:%s200] %v225
                  %v227 = vld [vmem:[%s207 + $0x84] sm:%s200]
                  %228 = vst [vmem:[%s208 + $0x24] sm:%s200] %v227
                  %v229 = vld [vmem:[%s207 + $0x88] sm:%s200]
                  %230 = vst [vmem:[%s208 + $0x28] sm:%s200] %v229
                  %v231 = vld [vmem:[%s207 + $0x8c] sm:%s200]
                  %232 = vst [vmem:[%s208 + $0x2c] sm:%s200] %v231
                  %v233 = vld [vmem:[%s207 + $0xc0] sm:%s200]
                  %234 = vst [vmem:[%s208 + $0x30] sm:%s200] %v233
                  %v235 = vld [vmem:[%s207 + $0xc4] sm:%s200]
                  %236 = vst [vmem:[%s208 + $0x34] sm:%s200] %v235
                  %v237 = vld [vmem:[%s207 + $0xc8] sm:%s200]
                  %238 = vst [vmem:[%s208 + $0x38] sm:%s200] %v237
                  %v239 = vld [vmem:[%s207 + $0xcc] sm:%s200]
                  %240 = vst [vmem:[%s208 + $0x3c] sm:%s200] %v239
                $region63: #{tpu_custom_call.1} parent=50 // loop_footer
                  %s206 = sadd.s32 1, %s202
                $region64: #{tpu_custom_call.1} parent=50 // loop_footer_branch
                  %201 = sbr.rel target = $region60
                $region65: #{tpu_custom_call.1} parent=50 // loop_exit
                  _
              $region51: #{tpu_custom_call.1} parent=35 // pred_fallthru
                _
            $region36: #{tpu_custom_call.1} parent=31 // pred_fallthru
              _
            // Predicated region
            $region37: #{tpu_custom_call.1} parent=31 // pred_check
              _
            $region38: #{tpu_custom_call.1} parent=31 // pred_check_branch
              %146 = sbr.rel (0) target = $region40
            $region39: #{tpu_custom_call.1} parent=31 // pred_region
              %s148 = ssub.s32 16, 1
              loop: start=0, step=1, limit=1
              $region41: #{tpu_custom_call.1} parent=39 // loop_pre_header
                _
              $region42: #{tpu_custom_call.1} parent=39 // loop_header
                %s150 = sphi 0, %s154
                %p151 = scmp.ge.s32.totalorder %s150, 1
                %s155 = sphi %s140, %s140
                %s156 = sphi %s137, %s137
              $region43: #{tpu_custom_call.1} parent=39 // loop_header_branch
                %153 = sbr.rel (%p151) target = $region47
              $region44: #{tpu_custom_call.1} parent=39 // loop_body
                %v157 = vld [vmem:[%s155] sm:%s148]
                %158 = vst [vmem:[%s156] sm:%s148] %v157
                %v159 = vld [vmem:[%s155 + $0x4] sm:%s148]
                %160 = vst [vmem:[%s156 + $0x4] sm:%s148] %v159
                %v161 = vld [vmem:[%s155 + $0x8] sm:%s148]
                %162 = vst [vmem:[%s156 + $0x8] sm:%s148] %v161
                %v163 = vld [vmem:[%s155 + $0xc] sm:%s148]
                %164 = vst [vmem:[%s156 + $0xc] sm:%s148] %v163
                %v165 = vld [vmem:[%s155 + $0x40] sm:%s148]
                %166 = vst [vmem:[%s156 + $0x10] sm:%s148] %v165
                %v167 = vld [vmem:[%s155 + $0x44] sm:%s148]
                %168 = vst [vmem:[%s156 + $0x14] sm:%s148] %v167
                %v169 = vld [vmem:[%s155 + $0x48] sm:%s148]
                %170 = vst [vmem:[%s156 + $0x18] sm:%s148] %v169
                %v171 = vld [vmem:[%s155 + $0x4c] sm:%s148]
                %172 = vst [vmem:[%s156 + $0x1c] sm:%s148] %v171
                %v173 = vld [vmem:[%s155 + $0x80] sm:%s148]
                %174 = vst [vmem:[%s156 + $0x20] sm:%s148] %v173
                %v175 = vld [vmem:[%s155 + $0x84] sm:%s148]
                %176 = vst [vmem:[%s156 + $0x24] sm:%s148] %v175
                %v177 = vld [vmem:[%s155 + $0x88] sm:%s148]
                %178 = vst [vmem:[%s156 + $0x28] sm:%s148] %v177
                %v179 = vld [vmem:[%s155 + $0x8c] sm:%s148]
                %180 = vst [vmem:[%s156 + $0x2c] sm:%s148] %v179
                %v181 = vld [vmem:[%s155 + $0xc0] sm:%s148]
                %182 = vst [vmem:[%s156 + $0x30] sm:%s148] %v181
                %v183 = vld [vmem:[%s155 + $0xc4] sm:%s148]
                %184 = vst [vmem:[%s156 + $0x34] sm:%s148] %v183
                %v185 = vld [vmem:[%s155 + $0xc8] sm:%s148]
                %186 = vst [vmem:[%s156 + $0x38] sm:%s148] %v185
                %v187 = vld [vmem:[%s155 + $0xcc] sm:%s148]
                %188 = vst [vmem:[%s156 + $0x3c] sm:%s148] %v187
              $region45: #{tpu_custom_call.1} parent=39 // loop_footer
                %s154 = sadd.s32 1, %s150
              $region46: #{tpu_custom_call.1} parent=39 // loop_footer_branch
                %149 = sbr.rel target = $region42
              $region47: #{tpu_custom_call.1} parent=39 // loop_exit
                _
            $region40: #{tpu_custom_call.1} parent=31 // pred_fallthru
              _
          $region32: #{tpu_custom_call.1} parent=27 // pred_fallthru
            _
          %241 = vnop
        $region28: #{tpu_custom_call.1} parent=23 // pred_fallthru
          _
      $region24: #{tpu_custom_call.1} parent=5 // pred_fallthru
        _
      %p242 = scmp.le.s32.totalorder 1, %s12
      %p243 = scmp.lt.s32.totalorder %s12, 5
      %p244 = pnand %p242, %p243
      %p245 = pneg %p244
      // Predicated region
      $region66: #{tpu_custom_call.1} parent=5 // pred_check
        _
      $region67: #{tpu_custom_call.1} parent=5 // pred_check_branch
        %247 = sbr.rel (%p244) target = $region69
      $region68: #{tpu_custom_call.1} parent=5 // pred_region
        %s248 = ssub.s32 %s12, 1
        %s249 = sand.u32 %s25, 1
        %s250 = sand.u32 %s25, 1
        %s251 = smul.addr %s250, 64
        %s252 = scalar_lea.vmem [#allocation2], %s251
        // Predicated region
        $region70: #{tpu_custom_call.1} parent=68 // pred_check
          %p253 = pneg %p38
        $region71: #{tpu_custom_call.1} parent=68 // pred_check_branch
          %255 = sbr.rel (%p253) target = $region73
        $region72: #{tpu_custom_call.1} parent=68 // pred_region
          _
        $region73: #{tpu_custom_call.1} parent=68 // pred_fallthru
          _
        %s256 = sand.u32 %s25, 1
        %s257 = sand.u32 %s25, 1
        %s258 = smul.addr %s257, 64
        %s259 = scalar_lea.vmem [#allocation2], %s258
        %p260 = pneg %p38
        %p261 = pneg %p35
        %p262 = pneg %p59
        %p263 = pneg %p56
        %p264 = pneg %p80
        %p265 = pneg %p77
        %p266 = pneg %p106
        %p267 = pneg %p103
        %s268 = sand.u32 %s93, 1
        %s269 = scalar_lea.sflag [#allocation4], %s268
        %s270 = sand.u32 %s93, 1
        %s271 = smul.addr %s270, 32
        %s272 = scalar_lea.vmem [#allocation3], %s271
        %s273 = smul.u32 4, %s17
        %s274 = smul.u32 4, %s17
        %v276 = vld [vmem:[%s2] sm:$0x1]
        %v277 = vld [vmem:[%s252] sm:$0xf]
        %v278 = vld [vmem:[%s252 + $0x4] sm:$0xf]
        %v279 = vld [vmem:[%s252 + $0x8] sm:$0xf]
        %v280 = vld [vmem:[%s252 + $0xc] sm:$0xf]
        %v281 = vunpack.c.l.bf16 %v277
        %v282 = vunpack.c.l.bf16 %v278
        %v283 = vunpack.c.l.bf16 %v279
        %v284 = vunpack.c.l.bf16 %v280
        %vm285 = vcmask 31744
        %v286 = vsel %vm285, %v281, 0.0
        %287 = vadd.xlane.f32.xlu0 %v286
        %v288 = vpop.xlane.xlu0 %287
        %v289 = vsel %vm285, %v282, 0.0
        %290 = vadd.xlane.f32.xlu0 %v289
        %v291 = vpop.xlane.xlu0 %290
        %v292 = vsel %vm285, %v283, 0.0
        %293 = vadd.xlane.f32.xlu0 %v292
        %v294 = vpop.xlane.xlu0 %293
        %v295 = vsel %vm285, %v284, 0.0
        %296 = vadd.xlane.f32.xlu0 %v295
        %v297 = vpop.xlane.xlu0 %296
        %v298 = vmul.f32 %v281, %v281
        %v299 = vmul.f32 %v282, %v282
        %v300 = vmul.f32 %v283, %v283
        %v301 = vmul.f32 %v284, %v284
        %v302 = vsel %vm285, %v298, 0.0
        %303 = vadd.xlane.f32.xlu0 %v302
        %v304 = vpop.xlane.xlu0 %303
        %v305 = vsel %vm285, %v299, 0.0
        %306 = vadd.xlane.f32.xlu0 %v305
        %v307 = vpop.xlane.xlu0 %306
        %v308 = vsel %vm285, %v300, 0.0
        %309 = vadd.xlane.f32.xlu0 %v308
        %v310 = vpop.xlane.xlu0 %309
        %v311 = vsel %vm285, %v301, 0.0
        %312 = vadd.xlane.f32.xlu0 %v311
        %v313 = vpop.xlane.xlu0 %312
        %v314 = vmul.f32 %v288, 0.25
        %v315 = vmul.f32 %v291, 0.25
        %v316 = vmul.f32 %v294, 0.25
        %v317 = vmul.f32 %v297, 0.25
        %v318 = vmul.f32 %v304, 0.25
        %v319 = vmul.f32 %v307, 0.25
        %v320 = vmul.f32 %v310, 0.25
        %v321 = vmul.f32 %v313, 0.25
        %v322 = vmul.f32 %v314, %v314
        %v323 = vmul.f32 %v315, %v315
        %v324 = vmul.f32 %v316, %v316
        %v325 = vmul.f32 %v317, %v317
        %v326 = vsub.f32 %v318, %v322
        %v327 = vsub.f32 %v319, %v323
        %v328 = vsub.f32 %v320, %v324
        %v329 = vsub.f32 %v321, %v325
        %v330 = vmax.f32 %v326, 0.0
        %v331 = vmax.f32 %v327, 0.0
        %v332 = vmax.f32 %v328, 0.0
        %v333 = vmax.f32 %v329, 0.0
        %v334 = vsub.f32 %v281, %v314
        %v335 = vsub.f32 %v282, %v315
        %v336 = vsub.f32 %v283, %v316
        %v337 = vsub.f32 %v284, %v317
        %v338 = vadd.f32 %v330, 1e-05
        %v339 = vadd.f32 %v331, 1e-05
        %v340 = vadd.f32 %v332, 1e-05
        %v341 = vadd.f32 %v333, 1e-05
        %v342 = vrsqrt.pop %v338
        %v343 = vrsqrt.pop %v339
        %v344 = vrsqrt.pop %v340
        %v345 = vrsqrt.pop %v341
        %v346 = vmul.f32 %v334, %v342
        %v347 = vmul.f32 %v335, %v343
        %v348 = vmul.f32 %v336, %v344
        %v349 = vmul.f32 %v337, %v345
        %v350 = vpack.c.bf16 %v347, %v346
        %v351 = vpack.c.bf16 %v349, %v348
        %v352 = vld [vmem:[%s1] sm:$0x3]
        %v354 = vsel %vm285, %v350, 0
        %v357 = vsel %vm285, %v351, 0
        %vm359 = vcmask 1041408
        %v361 = vsel %vm359, %v352, 0
        %363 = vmatprep.subr.bf16.mxu0 0
        %364 = vmatpush1.bf16.msra.mxu0 0
        %365 = vmatprep.subr.bf16.mxu0 0
        %366 = vmatpush1.bf16.msra.mxu0 0
        %367 = vmatprep.subr.bf16.mxu0 0
        %368 = vmatpush1.bf16.msra.mxu0 0
        %369 = vmatprep.subr.bf16.mxu0 0
        %370 = vmatpush1.bf16.msra.mxu0 0
        %371 = vmatprep.subr.bf16.mxu0 0
        %372 = vmatpush1.bf16.msra.mxu0 0
        %373 = vmatprep.subr.bf16.mxu0 0
        %374 = vmatpush1.bf16.msra.mxu0 0
        %375 = vmatprep.subr.bf16.mxu0 0
        %376 = vmatpush1.bf16.msra.mxu0 0
        %377 = vmatprep.subr.bf16.mxu0 0
        %378 = vmatpush1.bf16.msra.mxu0 %v361
        %379 = vmatprep.subr.bf16.mxu0 0
        %380 = vmatpush2.bf16.msra.mxu0 0
        %381 = vmatprep.subr.bf16.mxu0 0
        %382 = vmatpush2.bf16.msra.mxu0 0
        %383 = vmatprep.subr.bf16.mxu0 0
        %384 = vmatpush2.bf16.msra.mxu0 0
        %385 = vmatprep.subr.bf16.mxu0 0
        %386 = vmatpush2.bf16.msra.mxu0 0
        %387 = vmatprep.subr.bf16.mxu0 0
        %388 = vmatpush2.bf16.msra.mxu0 0
        %389 = vmatprep.subr.bf16.mxu0 0
        %390 = vmatpush2.bf16.msra.mxu0 0
        %391 = vmatprep.subr.bf16.mxu0 0
        %392 = vmatpush2.bf16.msra.mxu0 0
        %393 = vmatprep.subr.bf16.mxu0 0
        %394 = vmatpush2.bf16.msra.mxu0 0
        %395 = vmatprep.mubr.bf16.mxu0 0
        %396 = vmatmul.mubr.bf16.gmra.mxu0 %v354
        %v397 = vpop.f32.mrf.mxu0
        %v398 = vadd.f32 0.0, %v397
        %v399 = vpop.f32.mrf.mxu0
        %v400 = vpop.f32.mrf.mxu0
        %v401 = vadd.f32 0.0, %v400
        %v402 = vpop.f32.mrf.mxu0
        %403 = vmatprep.mubr.bf16.mxu0 0
        %404 = vmatmul.mubr.bf16.gmra.mxu0 %v357
        %v405 = vpop.f32.mrf.mxu0
        %v406 = vadd.f32 0.0, %v405
        %v407 = vpop.f32.mrf.mxu0
        %v408 = vpop.f32.mrf.mxu0
        %v409 = vadd.f32 0.0, %v408
        %v410 = vpop.f32.mrf.mxu0
        %411 = vdwg.mxu0
        %v413 = vlaneseq
        %v414 = vshrl.u32 %v413, 7
        %v415 = vsub.s32 0, %v414
        %v416 = vrot.slane %v276, %v415
        %v418 = vadd.f32 %v416, %v398
        %v419 = vadd.f32 %v416, %v401
        %v420 = vadd.f32 %v416, %v406
        %v421 = vadd.f32 %v416, %v409
        %422 = vst [vmem:[%s272] sm:$0xff] %v418
        %423 = vst [vmem:[%s272 + $0x8] sm:$0xff] %v419
        %424 = vst [vmem:[%s272 + $0x10] sm:$0xff] %v420
        %425 = vst [vmem:[%s272 + $0x18] sm:$0xff] %v421
        %v426 = vld [vmem:[%s272] sm:$0xff]
        %v427 = vld [vmem:[%s272 + $0x8] sm:$0xff]
        %v428 = vld [vmem:[%s272 + $0x10] sm:$0xff]
        %v429 = vld [vmem:[%s272 + $0x18] sm:$0xff]
        %s430 = scalar_lea.vmem %s252, 16 [#allocation2]
        %v431 = vld [vmem:[%s430] sm:$0xf]
        %v432 = vld [vmem:[%s430 + $0x4] sm:$0xf]
        %v433 = vld [vmem:[%s430 + $0x8] sm:$0xf]
        %v434 = vld [vmem:[%s430 + $0xc] sm:$0xf]
        %v435 = vunpack.c.l.bf16 %v431
        %v436 = vunpack.c.l.bf16 %v432
        %v437 = vunpack.c.l.bf16 %v433
        %v438 = vunpack.c.l.bf16 %v434
        %v439 = vsel %vm285, %v435, 0.0
        %440 = vadd.xlane.f32.xlu0 %v439
        %v441 = vpop.xlane.xlu0 %440
        %v442 = vsel %vm285, %v436, 0.0
        %443 = vadd.xlane.f32.xlu0 %v442
        %v444 = vpop.xlane.xlu0 %443
        %v445 = vsel %vm285, %v437, 0.0
        %446 = vadd.xlane.f32.xlu0 %v445
        %v447 = vpop.xlane.xlu0 %446
        %v448 = vsel %vm285, %v438, 0.0
        %449 = vadd.xlane.f32.xlu0 %v448
        %v450 = vpop.xlane.xlu0 %449
        %v451 = vmul.f32 %v435, %v435
        %v452 = vmul.f32 %v436, %v436
        %v453 = vmul.f32 %v437, %v437
        %v454 = vmul.f32 %v438, %v438
        %v455 = vsel %vm285, %v451, 0.0
        %456 = vadd.xlane.f32.xlu0 %v455
        %v457 = vpop.xlane.xlu0 %456
        %v458 = vsel %vm285, %v452, 0.0
        %459 = vadd.xlane.f32.xlu0 %v458
        %v460 = vpop.xlane.xlu0 %459
        %v461 = vsel %vm285, %v453, 0.0
        %462 = vadd.xlane.f32.xlu0 %v461
        %v463 = vpop.xlane.xlu0 %462
        %v464 = vsel %vm285, %v454, 0.0
        %465 = vadd.xlane.f32.xlu0 %v464
        %v466 = vpop.xlane.xlu0 %465
        %v467 = vmul.f32 %v441, 0.25
        %v468 = vmul.f32 %v444, 0.25
        %v469 = vmul.f32 %v447, 0.25
        %v470 = vmul.f32 %v450, 0.25
        %v471 = vmul.f32 %v457, 0.25
        %v472 = vmul.f32 %v460, 0.25
        %v473 = vmul.f32 %v463, 0.25
        %v474 = vmul.f32 %v466, 0.25
        %v475 = vmul.f32 %v467, %v467
        %v476 = vmul.f32 %v468, %v468
        %v477 = vmul.f32 %v469, %v469
        %v478 = vmul.f32 %v470, %v470
        %v479 = vsub.f32 %v471, %v475
        %v480 = vsub.f32 %v472, %v476
        %v481 = vsub.f32 %v473, %v477
        %v482 = vsub.f32 %v474, %v478
        %v483 = vmax.f32 %v479, 0.0
        %v484 = vmax.f32 %v480, 0.0
        %v485 = vmax.f32 %v481, 0.0
        %v486 = vmax.f32 %v482, 0.0
        %v487 = vsub.f32 %v435, %v467
        %v488 = vsub.f32 %v436, %v468
        %v489 = vsub.f32 %v437, %v469
        %v490 = vsub.f32 %v438, %v470
        %v491 = vadd.f32 %v483, 1e-05
        %v492 = vadd.f32 %v484, 1e-05
        %v493 = vadd.f32 %v485, 1e-05
        %v494 = vadd.f32 %v486, 1e-05
        %v495 = vrsqrt.pop %v491
        %v496 = vrsqrt.pop %v492
        %v497 = vrsqrt.pop %v493
        %v498 = vrsqrt.pop %v494
        %v499 = vmul.f32 %v487, %v495
        %v500 = vmul.f32 %v488, %v496
        %v501 = vmul.f32 %v489, %v497
        %v502 = vmul.f32 %v490, %v498
        %v503 = vpack.c.bf16 %v500, %v499
        %v504 = vpack.c.bf16 %v502, %v501
        %s505 = scalar_lea.vmem %s1, 2
        %v506 = vld [vmem:[%s505] sm:$0x3]
        %v508 = vsel %vm285, %v503, 0
        %v511 = vsel %vm285, %v504, 0
        %v514 = vsel %vm359, %v506, 0
        %516 = vmatprep.subr.bf16.mxu0 0
        %517 = vmatpush1.bf16.msra.mxu0 0
        %518 = vmatprep.subr.bf16.mxu0 0
        %519 = vmatpush1.bf16.msra.mxu0 0
        %520 = vmatprep.subr.bf16.mxu0 0
        %521 = vmatpush1.bf16.msra.mxu0 0
        %522 = vmatprep.subr.bf16.mxu0 0
        %523 = vmatpush1.bf16.msra.mxu0 0
        %524 = vmatprep.subr.bf16.mxu0 0
        %525 = vmatpush1.bf16.msra.mxu0 0
        %526 = vmatprep.subr.bf16.mxu0 0
        %527 = vmatpush1.bf16.msra.mxu0 0
        %528 = vmatprep.subr.bf16.mxu0 0
        %529 = vmatpush1.bf16.msra.mxu0 0
        %530 = vmatprep.subr.bf16.mxu0 0
        %531 = vmatpush1.bf16.msra.mxu0 %v514
        %532 = vmatprep.subr.bf16.mxu0 0
        %533 = vmatpush2.bf16.msra.mxu0 0
        %534 = vmatprep.subr.bf16.mxu0 0
        %535 = vmatpush2.bf16.msra.mxu0 0
        %536 = vmatprep.subr.bf16.mxu0 0
        %537 = vmatpush2.bf16.msra.mxu0 0
        %538 = vmatprep.subr.bf16.mxu0 0
        %539 = vmatpush2.bf16.msra.mxu0 0
        %540 = vmatprep.subr.bf16.mxu0 0
        %541 = vmatpush2.bf16.msra.mxu0 0
        %542 = vmatprep.subr.bf16.mxu0 0
        %543 = vmatpush2.bf16.msra.mxu0 0
        %544 = vmatprep.subr.bf16.mxu0 0
        %545 = vmatpush2.bf16.msra.mxu0 0
        %546 = vmatprep.subr.bf16.mxu0 0
        %547 = vmatpush2.bf16.msra.mxu0 0
        %548 = vmatprep.mubr.bf16.mxu0 0
        %549 = vmatmul.mubr.bf16.gmra.mxu0 %v508
        %v550 = vpop.f32.mrf.mxu0
        %v551 = vadd.f32 0.0, %v550
        %v552 = vpop.f32.mrf.mxu0
        %v553 = vpop.f32.mrf.mxu0
        %v554 = vadd.f32 0.0, %v553
        %v555 = vpop.f32.mrf.mxu0
        %556 = vmatprep.mubr.bf16.mxu0 0
        %557 = vmatmul.mubr.bf16.gmra.mxu0 %v511
        %v558 = vpop.f32.mrf.mxu0
        %v559 = vadd.f32 0.0, %v558
        %v560 = vpop.f32.mrf.mxu0
        %v561 = vpop.f32.mrf.mxu0
        %v562 = vadd.f32 0.0, %v561
        %v563 = vpop.f32.mrf.mxu0
        %564 = vdwg.mxu0
        %v565 = vadd.f32 %v426, %v551
        %v566 = vadd.f32 %v427, %v554
        %v567 = vadd.f32 %v428, %v559
        %v568 = vadd.f32 %v429, %v562
        %569 = vst [vmem:[%s272] sm:$0xff] %v565
        %570 = vst [vmem:[%s272 + $0x8] sm:$0xff] %v566
        %571 = vst [vmem:[%s272 + $0x10] sm:$0xff] %v567
        %572 = vst [vmem:[%s272 + $0x18] sm:$0xff] %v568
        %v573 = vld [vmem:[%s272] sm:$0xff]
        %v574 = vld [vmem:[%s272 + $0x8] sm:$0xff]
        %v575 = vld [vmem:[%s272 + $0x10] sm:$0xff]
        %v576 = vld [vmem:[%s272 + $0x18] sm:$0xff]
        %s577 = scalar_lea.vmem %s252, 32 [#allocation2]
        %v578 = vld [vmem:[%s577] sm:$0xf]
        %v579 = vld [vmem:[%s577 + $0x4] sm:$0xf]
        %v580 = vld [vmem:[%s577 + $0x8] sm:$0xf]
        %v581 = vld [vmem:[%s577 + $0xc] sm:$0xf]
        %v582 = vunpack.c.l.bf16 %v578
        %v583 = vunpack.c.l.bf16 %v579
        %v584 = vunpack.c.l.bf16 %v580
        %v585 = vunpack.c.l.bf16 %v581
        %v586 = vsel %vm285, %v582, 0.0
        %587 = vadd.xlane.f32.xlu0 %v586
        %v588 = vpop.xlane.xlu0 %587
        %v589 = vsel %vm285, %v583, 0.0
        %590 = vadd.xlane.f32.xlu0 %v589
        %v591 = vpop.xlane.xlu0 %590
        %v592 = vsel %vm285, %v584, 0.0
        %593 = vadd.xlane.f32.xlu0 %v592
        %v594 = vpop.xlane.xlu0 %593
        %v595 = vsel %vm285, %v585, 0.0
        %596 = vadd.xlane.f32.xlu0 %v595
        %v597 = vpop.xlane.xlu0 %596
        %v598 = vmul.f32 %v582, %v582
        %v599 = vmul.f32 %v583, %v583
        %v600 = vmul.f32 %v584, %v584
        %v601 = vmul.f32 %v585, %v585
        %v602 = vsel %vm285, %v598, 0.0
        %603 = vadd.xlane.f32.xlu0 %v602
        %v604 = vpop.xlane.xlu0 %603
        %v605 = vsel %vm285, %v599, 0.0
        %606 = vadd.xlane.f32.xlu0 %v605
        %v607 = vpop.xlane.xlu0 %606
        %v608 = vsel %vm285, %v600, 0.0
        %609 = vadd.xlane.f32.xlu0 %v608
        %v610 = vpop.xlane.xlu0 %609
        %v611 = vsel %vm285, %v601, 0.0
        %612 = vadd.xlane.f32.xlu0 %v611
        %v613 = vpop.xlane.xlu0 %612
        %v614 = vmul.f32 %v588, 0.25
        %v615 = vmul.f32 %v591, 0.25
        %v616 = vmul.f32 %v594, 0.25
        %v617 = vmul.f32 %v597, 0.25
        %v618 = vmul.f32 %v604, 0.25
        %v619 = vmul.f32 %v607, 0.25
        %v620 = vmul.f32 %v610, 0.25
        %v621 = vmul.f32 %v613, 0.25
        %v622 = vmul.f32 %v614, %v614
        %v623 = vmul.f32 %v615, %v615
        %v624 = vmul.f32 %v616, %v616
        %v625 = vmul.f32 %v617, %v617
        %v626 = vsub.f32 %v618, %v622
        %v627 = vsub.f32 %v619, %v623
        %v628 = vsub.f32 %v620, %v624
        %v629 = vsub.f32 %v621, %v625
        %v630 = vmax.f32 %v626, 0.0
        %v631 = vmax.f32 %v627, 0.0
        %v632 = vmax.f32 %v628, 0.0
        %v633 = vmax.f32 %v629, 0.0
        %v634 = vsub.f32 %v582, %v614
        %v635 = vsub.f32 %v583, %v615
        %v636 = vsub.f32 %v584, %v616
        %v637 = vsub.f32 %v585, %v617
        %v638 = vadd.f32 %v630, 1e-05
        %v639 = vadd.f32 %v631, 1e-05
        %v640 = vadd.f32 %v632, 1e-05
        %v641 = vadd.f32 %v633, 1e-05
        %v642 = vrsqrt.pop %v638
        %v643 = vrsqrt.pop %v639
        %v644 = vrsqrt.pop %v640
        %v645 = vrsqrt.pop %v641
        %v646 = vmul.f32 %v634, %v642
        %v647 = vmul.f32 %v635, %v643
        %v648 = vmul.f32 %v636, %v644
        %v649 = vmul.f32 %v637, %v645
        %v650 = vpack.c.bf16 %v647, %v646
        %v651 = vpack.c.bf16 %v649, %v648
        %s652 = scalar_lea.vmem %s1, 4
        %v653 = vld [vmem:[%s652] sm:$0x3]
        %v655 = vsel %vm285, %v650, 0
        %v658 = vsel %vm285, %v651, 0
        %v661 = vsel %vm359, %v653, 0
        %663 = vmatprep.subr.bf16.mxu0 0
        %664 = vmatpush1.bf16.msra.mxu0 0
        %665 = vmatprep.subr.bf16.mxu0 0
        %666 = vmatpush1.bf16.msra.mxu0 0
        %667 = vmatprep.subr.bf16.mxu0 0
        %668 = vmatpush1.bf16.msra.mxu0 0
        %669 = vmatprep.subr.bf16.mxu0 0
        %670 = vmatpush1.bf16.msra.mxu0 0
        %671 = vmatprep.subr.bf16.mxu0 0
        %672 = vmatpush1.bf16.msra.mxu0 0
        %673 = vmatprep.subr.bf16.mxu0 0
        %674 = vmatpush1.bf16.msra.mxu0 0
        %675 = vmatprep.subr.bf16.mxu0 0
        %676 = vmatpush1.bf16.msra.mxu0 0
        %677 = vmatprep.subr.bf16.mxu0 0
        %678 = vmatpush1.bf16.msra.mxu0 %v661
        %679 = vmatprep.subr.bf16.mxu0 0
        %680 = vmatpush2.bf16.msra.mxu0 0
        %681 = vmatprep.subr.bf16.mxu0 0
        %682 = vmatpush2.bf16.msra.mxu0 0
        %683 = vmatprep.subr.bf16.mxu0 0
        %684 = vmatpush2.bf16.msra.mxu0 0
        %685 = vmatprep.subr.bf16.mxu0 0
        %686 = vmatpush2.bf16.msra.mxu0 0
        %687 = vmatprep.subr.bf16.mxu0 0
        %688 = vmatpush2.bf16.msra.mxu0 0
        %689 = vmatprep.subr.bf16.mxu0 0
        %690 = vmatpush2.bf16.msra.mxu0 0
        %691 = vmatprep.subr.bf16.mxu0 0
        %692 = vmatpush2.bf16.msra.mxu0 0
        %693 = vmatprep.subr.bf16.mxu0 0
        %694 = vmatpush2.bf16.msra.mxu0 0
        %695 = vmatprep.mubr.bf16.mxu0 0
        %696 = vmatmul.mubr.bf16.gmra.mxu0 %v655
        %v697 = vpop.f32.mrf.mxu0
        %v698 = vadd.f32 0.0, %v697
        %v699 = vpop.f32.mrf.mxu0
        %v700 = vpop.f32.mrf.mxu0
        %v701 = vadd.f32 0.0, %v700
        %v702 = vpop.f32.mrf.mxu0
        %703 = vmatprep.mubr.bf16.mxu0 0
        %704 = vmatmul.mubr.bf16.gmra.mxu0 %v658
        %v705 = vpop.f32.mrf.mxu0
        %v706 = vadd.f32 0.0, %v705
        %v707 = vpop.f32.mrf.mxu0
        %v708 = vpop.f32.mrf.mxu0
        %v709 = vadd.f32 0.0, %v708
        %v710 = vpop.f32.mrf.mxu0
        %711 = vdwg.mxu0
        %v712 = vadd.f32 %v573, %v698
        %v713 = vadd.f32 %v574, %v701
        %v714 = vadd.f32 %v575, %v706
        %v715 = vadd.f32 %v576, %v709
        %716 = vst [vmem:[%s272] sm:$0xff] %v712
        %717 = vst [vmem:[%s272 + $0x8] sm:$0xff] %v713
        %718 = vst [vmem:[%s272 + $0x10] sm:$0xff] %v714
        %719 = vst [vmem:[%s272 + $0x18] sm:$0xff] %v715
        %v720 = vld [vmem:[%s272] sm:$0xff]
        %v721 = vld [vmem:[%s272 + $0x8] sm:$0xff]
        %v722 = vld [vmem:[%s272 + $0x10] sm:$0xff]
        %v723 = vld [vmem:[%s272 + $0x18] sm:$0xff]
        %s724 = scalar_lea.vmem %s252, 48 [#allocation2]
        %v725 = vld [vmem:[%s724] sm:$0xf]
        %v726 = vld [vmem:[%s724 + $0x4] sm:$0xf]
        %v727 = vld [vmem:[%s724 + $0x8] sm:$0xf]
        %v728 = vld [vmem:[%s724 + $0xc] sm:$0xf]
        %v729 = vunpack.c.l.bf16 %v725
        %v730 = vunpack.c.l.bf16 %v726
        %v731 = vunpack.c.l.bf16 %v727
        %v732 = vunpack.c.l.bf16 %v728
        %v733 = vsel %vm285, %v729, 0.0
        %734 = vadd.xlane.f32.xlu0 %v733
        %v735 = vpop.xlane.xlu0 %734
        %v736 = vsel %vm285, %v730, 0.0
        %737 = vadd.xlane.f32.xlu0 %v736
        %v738 = vpop.xlane.xlu0 %737
        %v739 = vsel %vm285, %v731, 0.0
        %740 = vadd.xlane.f32.xlu0 %v739
        %v741 = vpop.xlane.xlu0 %740
        %v742 = vsel %vm285, %v732, 0.0
        %743 = vadd.xlane.f32.xlu0 %v742
        %v744 = vpop.xlane.xlu0 %743
        %v745 = vmul.f32 %v729, %v729
        %v746 = vmul.f32 %v730, %v730
        %v747 = vmul.f32 %v731, %v731
        %v748 = vmul.f32 %v732, %v732
        %v749 = vsel %vm285, %v745, 0.0
        %750 = vadd.xlane.f32.xlu0 %v749
        %v751 = vpop.xlane.xlu0 %750
        %v752 = vsel %vm285, %v746, 0.0
        %753 = vadd.xlane.f32.xlu0 %v752
        %v754 = vpop.xlane.xlu0 %753
        %v755 = vsel %vm285, %v747, 0.0
        %756 = vadd.xlane.f32.xlu0 %v755
        %v757 = vpop.xlane.xlu0 %756
        %v758 = vsel %vm285, %v748, 0.0
        %759 = vadd.xlane.f32.xlu0 %v758
        %v760 = vpop.xlane.xlu0 %759
        %v761 = vmul.f32 %v735, 0.25
        %v762 = vmul.f32 %v738, 0.25
        %v763 = vmul.f32 %v741, 0.25
        %v764 = vmul.f32 %v744, 0.25
        %v765 = vmul.f32 %v751, 0.25
        %v766 = vmul.f32 %v754, 0.25
        %v767 = vmul.f32 %v757, 0.25
        %v768 = vmul.f32 %v760, 0.25
        %v769 = vmul.f32 %v761, %v761
        %v770 = vmul.f32 %v762, %v762
        %v771 = vmul.f32 %v763, %v763
        %v772 = vmul.f32 %v764, %v764
        %v773 = vsub.f32 %v765, %v769
        %v774 = vsub.f32 %v766, %v770
        %v775 = vsub.f32 %v767, %v771
        %v776 = vsub.f32 %v768, %v772
        %v777 = vmax.f32 %v773, 0.0
        %v778 = vmax.f32 %v774, 0.0
        %v779 = vmax.f32 %v775, 0.0
        %v780 = vmax.f32 %v776, 0.0
        %v781 = vsub.f32 %v729, %v761
        %v782 = vsub.f32 %v730, %v762
        %v783 = vsub.f32 %v731, %v763
        %v784 = vsub.f32 %v732, %v764
        %v785 = vadd.f32 %v777, 1e-05
        %v786 = vadd.f32 %v778, 1e-05
        %v787 = vadd.f32 %v779, 1e-05
        %v788 = vadd.f32 %v780, 1e-05
        %v789 = vrsqrt.pop %v785
        %v790 = vrsqrt.pop %v786
        %v791 = vrsqrt.pop %v787
        %v792 = vrsqrt.pop %v788
        %v793 = vmul.f32 %v781, %v789
        %v794 = vmul.f32 %v782, %v790
        %v795 = vmul.f32 %v783, %v791
        %v796 = vmul.f32 %v784, %v792
        %v797 = vpack.c.bf16 %v794, %v793
        %v798 = vpack.c.bf16 %v796, %v795
        %s799 = scalar_lea.vmem %s1, 6
        %v800 = vld [vmem:[%s799] sm:$0x3]
        %v802 = vsel %vm285, %v797, 0
        %v805 = vsel %vm285, %v798, 0
        %v808 = vsel %vm359, %v800, 0
        %810 = vmatprep.subr.bf16.mxu0 0
        %811 = vmatpush1.bf16.msra.mxu0 0
        %812 = vmatprep.subr.bf16.mxu0 0
        %813 = vmatpush1.bf16.msra.mxu0 0
        %814 = vmatprep.subr.bf16.mxu0 0
        %815 = vmatpush1.bf16.msra.mxu0 0
        %816 = vmatprep.subr.bf16.mxu0 0
        %817 = vmatpush1.bf16.msra.mxu0 0
        %818 = vmatprep.subr.bf16.mxu0 0
        %819 = vmatpush1.bf16.msra.mxu0 0
        %820 = vmatprep.subr.bf16.mxu0 0
        %821 = vmatpush1.bf16.msra.mxu0 0
        %822 = vmatprep.subr.bf16.mxu0 0
        %823 = vmatpush1.bf16.msra.mxu0 0
        %824 = vmatprep.subr.bf16.mxu0 0
        %825 = vmatpush1.bf16.msra.mxu0 %v808
        %826 = vmatprep.subr.bf16.mxu0 0
        %827 = vmatpush2.bf16.msra.mxu0 0
        %828 = vmatprep.subr.bf16.mxu0 0
        %829 = vmatpush2.bf16.msra.mxu0 0
        %830 = vmatprep.subr.bf16.mxu0 0
        %831 = vmatpush2.bf16.msra.mxu0 0
        %832 = vmatprep.subr.bf16.mxu0 0
        %833 = vmatpush2.bf16.msra.mxu0 0
        %834 = vmatprep.subr.bf16.mxu0 0
        %835 = vmatpush2.bf16.msra.mxu0 0
        %836 = vmatprep.subr.bf16.mxu0 0
        %837 = vmatpush2.bf16.msra.mxu0 0
        %838 = vmatprep.subr.bf16.mxu0 0
        %839 = vmatpush2.bf16.msra.mxu0 0
        %840 = vmatprep.subr.bf16.mxu0 0
        %841 = vmatpush2.bf16.msra.mxu0 0
        %842 = vmatprep.mubr.bf16.mxu0 0
        %843 = vmatmul.mubr.bf16.gmra.mxu0 %v802
        %v844 = vpop.f32.mrf.mxu0
        %v845 = vadd.f32 0.0, %v844
        %v846 = vpop.f32.mrf.mxu0
        %v847 = vpop.f32.mrf.mxu0
        %v848 = vadd.f32 0.0, %v847
        %v849 = vpop.f32.mrf.mxu0
        %850 = vmatprep.mubr.bf16.mxu0 0
        %851 = vmatmul.mubr.bf16.gmra.mxu0 %v805
        %v852 = vpop.f32.mrf.mxu0
        %v853 = vadd.f32 0.0, %v852
        %v854 = vpop.f32.mrf.mxu0
        %v855 = vpop.f32.mrf.mxu0
        %v856 = vadd.f32 0.0, %v855
        %v857 = vpop.f32.mrf.mxu0
        %858 = vdwg.mxu0
        %v859 = vadd.f32 %v720, %v845
        %v860 = vadd.f32 %v721, %v848
        %v861 = vadd.f32 %v722, %v853
        %v862 = vadd.f32 %v723, %v856
        %863 = vst [vmem:[%s272] sm:$0xff] %v859
        %864 = vst [vmem:[%s272 + $0x8] sm:$0xff] %v860
        %865 = vst [vmem:[%s272 + $0x10] sm:$0xff] %v861
        %866 = vst [vmem:[%s272 + $0x18] sm:$0xff] %v862
        %s867 = sand.u32 %s93, 1
        %s868 = scalar_lea.sflag [#allocation4], %s867
        %s869 = sand.u32 %s93, 1
        %s870 = smul.addr %s869, 32
        %s871 = scalar_lea.vmem [#allocation3], %s870
        // Predicated region
        $region74: #{tpu_custom_call.1} parent=68 // pred_check
          %p872 = pneg %p103
        $region75: #{tpu_custom_call.1} parent=68 // pred_check_branch
          %874 = sbr.rel (%p872) target = $region77
        $region76: #{tpu_custom_call.1} parent=68 // pred_region
          %s875 = smul.u32 4, %s17
          %s877 = ssub.s32 512, 512
          %878 = vsyncadd %s868, %s877
          %s879 = smul.addr %s875, 128
          %s880 = scalar_lea.hbm %s3, %s879
          %s881 = sshll.u32 %s871, 4
          %s882 = int_to_ptr.vmem [resolvable:$true] %s881
          %887 = dma.vmem_to_hbm [thread:$0]  %s882, 512, %s880, %s868, 128, 128, 8
        $region77: #{tpu_custom_call.1} parent=68 // pred_fallthru
          _
      $region69: #{tpu_custom_call.1} parent=5 // pred_fallthru
        _
      %p888 = scmp.le.s32.totalorder 2, %s12
      // Predicated region
      $region78: #{tpu_custom_call.1} parent=5 // pred_check
        %p889 = pneg %p888
      $region79: #{tpu_custom_call.1} parent=5 // pred_check_branch
        %891 = sbr.rel (%p889) target = $region81
      $region80: #{tpu_custom_call.1} parent=5 // pred_region
        %s892 = ssub.s32 %s12, 2
        // Predicated region
        $region82: #{tpu_custom_call.1} parent=80 // pred_check
          %p893 = pneg %p109
        $region83: #{tpu_custom_call.1} parent=80 // pred_check_branch
          %895 = sbr.rel (%p893) target = $region85
        $region84: #{tpu_custom_call.1} parent=80 // pred_region
          %s896 = sand.u32 %s94, 1
          %s897 = scalar_lea.sflag [#allocation4], %s896
          %s898 = sand.u32 %s94, 1
          %s899 = smul.addr %s898, 32
          %s900 = scalar_lea.vmem [#allocation3], %s899
          %901 = dma.done %s897, 512
        $region85: #{tpu_custom_call.1} parent=80 // pred_fallthru
          _
      $region81: #{tpu_custom_call.1} parent=5 // pred_fallthru
        _
    $region6: #{tpu_custom_call.1} parent=1 // loop_footer
      %s16 = sadd.s32 1, %s12
    $region7: #{tpu_custom_call.1} parent=1 // loop_footer_branch
      %11 = sbr.rel target = $region3
    $region8: #{tpu_custom_call.1} parent=1 // loop_exit
      _
    %902 = vsyncpa [#allocation4], 1
    %s903 = scalar_lea.sflag [#allocation4], 1
    %904 = vsyncpa %s903, 1

</llo_original>
